<compile_context>
chip_gen: v7x
topology: tpu7x:2x2x1
jax: 0.10.0
libtpu: 0.0.40
codegen_flags: <defaults>
</compile_context>

<pallas_src>
import jax
import jax.numpy as jnp
from jax import lax
from jax.experimental import pallas as pl
from jax.experimental.pallas import tpu as pltpu


def _round_up(x, m):
    return ((x + m - 1) // m) * m


def _num_parallel_cores():
    """TensorCores addressable by one program (megacore v4/v5p, dual-TC v7x)."""
    try:
        kind = jax.devices()[0].device_kind.lower()
    except Exception:
        return 1
    if ("v7" in kind) or ("v5p" in kind) or ("v4" in kind):
        return 2
    return 1


def _choose_tile_f(in_features, want_tiles):
    """Pick a lane-dense feature tile; pad the feature axis up to a multiple.

    Prefers large tiles (>= 512) so per-grid-step overhead is amortised, but
    rejects candidates that would waste > 25% of the feature DMA on zero
    columns, and (on dual-core chips) candidates that would leave only one
    'parallel' feature tile.
    """
    f_min = _round_up(in_features, 128)
    tile_f = 128
    for cand in (2048, 1024, 512, 256, 128):
        f_pad = _round_up(f_min, cand)
        if cand > 128 and f_pad // cand < want_tiles:
            continue                       # would leave a TensorCore idle
        if (f_pad - f_min) * 4 > f_min:
            continue                       # > 25% zero-column DMA waste
        tile_f = cand
        break
    return tile_f, _round_up(f_min, tile_f)


def _segment_mean_kernel(starts_ref, sizes_ref, x_ref, o_ref, acc_ref):
    """Grid = (feature_tiles ['parallel'], node_tiles ['arbitrary'/reduction]).

    starts_ref, sizes_ref : VMEM int32[G_pad, 1]          (resident every step)
    x_ref                 : VMEM x.dtype[TILE_N, TILE_F]  (node/feature tile)
    o_ref                 : VMEM x.dtype[G_pad, TILE_F]   (this feature tile)
    acc_ref               : VMEM f32[G_pad, TILE_F]       (scratch accumulator)
    """
    ni = pl.program_id(1)
    tile_n = x_ref.shape[0]
    g_pad = acc_ref.shape[0]

    @pl.when(ni == 0)
    def _init():
        acc_ref[...] = jnp.zeros_like(acc_ref)

    # Membership one-hot for this node tile: (G_pad, TILE_N).  Exact in bf16.
    starts = starts_ref[...]                        # (G_pad, 1)
    ends = starts + sizes_ref[...]                  # (G_pad, 1)
    node_idx = ni * tile_n + lax.broadcasted_iota(
        jnp.int32, (g_pad, tile_n), 1)
    member = ((node_idx >= starts) & (node_idx < ends)).astype(x_ref.dtype)

    # Segment sum on the MXU; accumulation forced to f32.
    acc_ref[...] += jnp.dot(member, x_ref[...],
                            preferred_element_type=jnp.float32)

    @pl.when(ni == pl.num_programs(1) - 1)
    def _finalize():
        # size == 0 -> accumulated sum is already 0; clamp denom to avoid 0/0.
        # Exact per-graph reciprocal (G_pad x 1) + broadcast multiply is much
        # cheaper than a full (G_pad, TILE_F) divide.
        denom = jnp.maximum(sizes_ref[...], 1).astype(jnp.float32)
        inv = 1.0 / denom
        o_ref[...] = (acc_ref[...] * inv).astype(o_ref.dtype)


def grover_readout_mean(graph_embeddings, starts, sizes, *, compute_dtype=None):
    """Mean readout over scopes (GroverReadout, rtype='mean').

    graph_embeddings : [num_nodes, in_features]  (float32 or bfloat16)
    starts, sizes    : int32[num_graphs]  (scope = zip(starts, sizes))
    compute_dtype    : optionally down-cast embeddings (e.g. jnp.bfloat16)
                       before the kernel to halve HBM traffic; membership is
                       exact and accumulation stays f32.
    returns          : [num_graphs, in_features] in the embedding dtype.
    """
    if compute_dtype is not None:
        graph_embeddings = graph_embeddings.astype(compute_dtype)

    num_nodes, in_features = graph_embeddings.shape
    num_graphs = starts.shape[0]
    dtype = graph_embeddings.dtype
    dtype_bytes = jnp.dtype(dtype).itemsize
    # Sublane packing: f32 -> 8 rows/vreg, bf16 -> 16.
    sublane = {4: 8, 2: 16, 1: 32}.get(dtype_bytes, 8)

    # ---- Tile selection: ~4 MiB lane-dense x blocks, >=2 feature tiles on
    # ---- dual-core chips, padding waste bounded. ----
    n_cores = _num_parallel_cores()
    tile_f, f_pad = _choose_tile_f(in_features, want_tiles=n_cores)

    max_tile_n = 2048 if dtype_bytes <= 2 else 1024
    tile_n = (4 << 20) // (tile_f * dtype_bytes)       # ~4 MiB x-block target
    tile_n = max(sublane, min(tile_n, max_tile_n))
    tile_n = _round_up(tile_n, sublane)
    tile_n = min(tile_n, _round_up(num_nodes, sublane))
    n_pad = _round_up(num_nodes, tile_n)

    g_pad = _round_up(num_graphs, sublane)

    # ---- Padding (zero rows/cols cannot match any scope) ----
    x = graph_embeddings
    if (n_pad, f_pad) != (num_nodes, in_features):
        x = jnp.pad(x, ((0, n_pad - num_nodes), (0, f_pad - in_features)))
    starts_p = jnp.pad(starts.astype(jnp.int32),
                       (0, g_pad - num_graphs)).reshape(g_pad, 1)
    # Padded graphs get size 0 -> zero rows, sliced off below.
    sizes_p = jnp.pad(sizes.astype(jnp.int32),
                      (0, g_pad - num_graphs)).reshape(g_pad, 1)

    grid = (f_pad // tile_f, n_pad // tile_n)

    # ---- VMEM budget: double-buffered x/out blocks + accumulator ----
    x_block = tile_n * tile_f * dtype_bytes
    out_block = g_pad * tile_f * dtype_bytes
    acc_block = g_pad * tile_f * 4
    scalar_blocks = 2 * 2 * g_pad * 128 * 4            # starts/sizes, lane-padded
    vmem_needed = 2 * x_block + 2 * out_block + acc_block + scalar_blocks
    vmem_limit = int(min(max(vmem_needed + (4 << 20), 16 << 20), 32 << 20))

    # Advisory cost: bandwidth-heavy custom call, tiny flops -> lets XLA
    # overlap it with surrounding model compute.
    cost = pl.CostEstimate(
        flops=2 * g_pad * n_pad * f_pad,
        transcendentals=0,
        bytes_accessed=(n_pad * f_pad + g_pad * f_pad) * dtype_bytes
        + 2 * g_pad * 4,
    )

    grid_spec = pltpu.PrefetchScalarGridSpec(
        num_scalar_prefetch=0,
        grid=grid,
        in_specs=[
            pl.BlockSpec((g_pad, 1), lambda fi, ni: (0, 0)),           # starts
            pl.BlockSpec((g_pad, 1), lambda fi, ni: (0, 0)),           # sizes
            pl.BlockSpec((tile_n, tile_f), lambda fi, ni: (ni, fi)),   # x tile
        ],
        out_specs=pl.BlockSpec((g_pad, tile_f), lambda fi, ni: (0, fi)),
        scratch_shapes=[pltpu.VMEM((g_pad, tile_f), jnp.float32)],
    )

    out = pl.pallas_call(
        _segment_mean_kernel,
        out_shape=jax.ShapeDtypeStruct((g_pad, f_pad), dtype),
        grid_spec=grid_spec,
        compiler_params=pltpu.CompilerParams(
            dimension_semantics=("parallel", "arbitrary"),
            vmem_limit_bytes=vmem_limit),
        cost_estimate=cost,
    )(starts_p, sizes_p, x)

    return out[:num_graphs, :in_features]


def _reference_readout_mean(graph_embeddings, scope):
    """Pure-JAX reference mirroring the PyTorch forward ('mean' readout)."""
    in_features = graph_embeddings.shape[1]
    rows = []
    for (a_start, a_size) in scope:
        if a_size == 0:
            rows.append(jnp.zeros((in_features,), graph_embeddings.dtype))
        else:
            emb = graph_embeddings[a_start:a_start + a_size]
            rows.append(emb.sum(axis=0) / a_size)
    return jnp.stack(rows, axis=0)


if __name__ == "__main__":
    key = jax.random.PRNGKey(0)

    num_nodes = 16
    in_features = 32
    graph_embeddings = jax.random.normal(key, (num_nodes, in_features),
                                         dtype=jnp.float32)

    # scope = [[start, size], ...]; includes a zero-size graph to exercise the
    # cached_zero_vector branch.
    scope = [(0, 6), (6, 0), (6, 10)]
    starts = jnp.asarray([s for s, _ in scope], dtype=jnp.int32)
    sizes = jnp.asarray([n for _, n in scope], dtype=jnp.int32)

    # f32 path (numerically matches the PyTorch forward).
    out = grover_readout_mean(graph_embeddings, starts, sizes)
    out = jax.block_until_ready(out)
    ref = _reference_readout_mean(graph_embeddings, scope)
    assert out.shape == (len(scope), in_features)
    assert jnp.allclose(out, ref, atol=1e-4, rtol=1e-4), "f32 mismatch vs reference"

    # bf16 path (halved HBM traffic; accumulation stays f32 inside the kernel).
    out_bf16 = grover_readout_mean(graph_embeddings, starts, sizes,
                                   compute_dtype=jnp.bfloat16)
    out_bf16 = jax.block_until_ready(out_bf16)
    ref_bf16 = _reference_readout_mean(
        graph_embeddings.astype(jnp.bfloat16).astype(jnp.float32), scope)
    assert out_bf16.dtype == jnp.bfloat16
    assert jnp.allclose(out_bf16.astype(jnp.float32), ref_bf16,
                        atol=2e-2, rtol=2e-2), "bf16 mismatch vs reference"

    print("KERNEL_OK")
</pallas_src>

<mosaic_0001>
module attributes {stable_mosaic.version = 11 : i64} {
  func.func @_segment_mean_kernel(%arg0: i32, %arg1: i32, %arg2: memref<8x1xi32, #tpu.memory_space<vmem>>, %arg3: memref<8x1xi32, #tpu.memory_space<vmem>>, %arg4: memref<16x128xf32, #tpu.memory_space<vmem>>, %arg5: memref<8x128xf32, #tpu.memory_space<vmem>>, %arg6: memref<8x128xf32, #tpu.memory_space<vmem>>) attributes {dimension_semantics = [#tpu.dimension_semantics<parallel>, #tpu.dimension_semantics<arbitrary>], iteration_bounds = array<i64: 1, 1>, scalar_prefetch = 0 : i64, scratch_operands = 1 : i64, tpu.core_type = #tpu.core_type<tc>, window_params = [{pipeline_mode = #tpu.pipeline_mode<synchronous>, transform_indices = @transform_0, window_bounds = array<i64: 8, 1>}, {pipeline_mode = #tpu.pipeline_mode<synchronous>, transform_indices = @transform_1, window_bounds = array<i64: 8, 1>}, {transform_indices = @transform_2, window_bounds = array<i64: 16, 128>}, {transform_indices = @transform_3, window_bounds = array<i64: 8, 128>}]} {
    %c0_i32 = arith.constant 0 : i32
    %0 = arith.cmpi eq, %arg1, %c0_i32 : i32
    %1 = arith.extui %0 : i1 to i32
    %c0_i32_0 = arith.constant 0 : i32
    %2 = arith.cmpi ne, %1, %c0_i32_0 : i32
    scf.if %2 {
      %cst_12 = arith.constant 0.000000e+00 : f32
      %25 = vector.broadcast %cst_12 : f32 to vector<8x128xf32>
      %c0_13 = arith.constant 0 : index
      %c0_14 = arith.constant 0 : index
      %26 = vector.load %arg6[%c0_13, %c0_14] : memref<8x128xf32, #tpu.memory_space<vmem>>, vector<8x128xf32>
      tpu.vector_store %arg6[%c0_13, %c0_14], %25 {strides = array<i32>} : memref<8x128xf32, #tpu.memory_space<vmem>>, vector<8x128xf32>,
    } else {
    }
    %c0 = arith.constant 0 : index
    %c0_1 = arith.constant 0 : index
    %3 = vector.load %arg2[%c0, %c0_1] : memref<8x1xi32, #tpu.memory_space<vmem>>, vector<8x1xi32>
    %c0_2 = arith.constant 0 : index
    %c0_3 = arith.constant 0 : index
    %4 = vector.load %arg3[%c0_2, %c0_3] : memref<8x1xi32, #tpu.memory_space<vmem>>, vector<8x1xi32>
    %5 = arith.addi %3, %4 : vector<8x1xi32>
    %c16_i32 = arith.constant 16 : i32
    %6 = arith.muli %arg1, %c16_i32 : i32
    %7 = tpu.iota {dimensions = array<i32: 1>} : vector<8x16xi32>
    %8 = vector.broadcast %6 : i32 to vector<8x16xi32>
    %9 = arith.addi %8, %7 : vector<8x16xi32>
    %10 = vector.broadcast %3 : vector<8x1xi32> to vector<8x16xi32>
    %11 = arith.cmpi sge, %9, %10 : vector<8x16xi32>
    %12 = vector.broadcast %5 : vector<8x1xi32> to vector<8x16xi32>
    %13 = arith.cmpi slt, %9, %12 : vector<8x16xi32>
    %14 = arith.andi %11, %13 : vector<8x16xi1>
    %15 = arith.extui %14 : vector<8x16xi1> to vector<8x16xi32>
    %16 = arith.sitofp %15 : vector<8x16xi32> to vector<8x16xf32>
    %c0_4 = arith.constant 0 : index
    %c0_5 = arith.constant 0 : index
    %17 = vector.load %arg6[%c0_4, %c0_5] : memref<8x128xf32, #tpu.memory_space<vmem>>, vector<8x128xf32>
    %c0_6 = arith.constant 0 : index
    %c0_7 = arith.constant 0 : index
    %18 = vector.load %arg4[%c0_6, %c0_7] : memref<16x128xf32, #tpu.memory_space<vmem>>, vector<16x128xf32>
    %cst = arith.constant dense<0.000000e+00> : vector<8x128xf32>
    %19 = tpu.matmul %16, %18, %cst {dimension_numbers = #tpu.dot_dimension_numbers<[1], [0], [0], [1], [0, 0, 1, 1], [], []>} : vector<8x16xf32>, vector<16x128xf32>, vector<8x128xf32> -> vector<8x128xf32>
    %20 = arith.addf %17, %19 : vector<8x128xf32>
    %c0_8 = arith.constant 0 : index
    %c0_9 = arith.constant 0 : index
    %21 = vector.load %arg6[%c0_8, %c0_9] : memref<8x128xf32, #tpu.memory_space<vmem>>, vector<8x128xf32>
    tpu.vector_store %arg6[%c0_8, %c0_9], %20 {strides = array<i32>} : memref<8x128xf32, #tpu.memory_space<vmem>>, vector<8x128xf32>,
    %c0_i32_10 = arith.constant 0 : i32
    %22 = arith.cmpi eq, %arg1, %c0_i32_10 : i32
    %23 = arith.extui %22 : i1 to i32
    %c0_i32_11 = arith.constant 0 : i32
    %24 = arith.cmpi ne, %23, %c0_i32_11 : i32
    scf.if %24 {
      %c0_12 = arith.constant 0 : index
      %c0_13 = arith.constant 0 : index
      %25 = vector.load %arg3[%c0_12, %c0_13] : memref<8x1xi32, #tpu.memory_space<vmem>>, vector<8x1xi32>
      %c1_i32 = arith.constant 1 : i32
      %26 = vector.broadcast %c1_i32 : i32 to vector<8x1xi32>
      %27 = arith.maxsi %25, %26 : vector<8x1xi32>
      %28 = arith.sitofp %27 : vector<8x1xi32> to vector<8x1xf32>
      %cst_14 = arith.constant 1.000000e+00 : f32
      %29 = vector.broadcast %cst_14 : f32 to vector<8x1xf32>
      %30 = arith.divf %29, %28 : vector<8x1xf32>
      %c0_15 = arith.constant 0 : index
      %c0_16 = arith.constant 0 : index
      %31 = vector.load %arg6[%c0_15, %c0_16] : memref<8x128xf32, #tpu.memory_space<vmem>>, vector<8x128xf32>
      %32 = vector.broadcast %30 : vector<8x1xf32> to vector<8x128xf32>
      %33 = arith.mulf %31, %32 : vector<8x128xf32>
      %c0_17 = arith.constant 0 : index
      %c0_18 = arith.constant 0 : index
      %34 = vector.load %arg5[%c0_17, %c0_18] : memref<8x128xf32, #tpu.memory_space<vmem>>, vector<8x128xf32>
      tpu.vector_store %arg5[%c0_17, %c0_18], %33 {strides = array<i32>} : memref<8x128xf32, #tpu.memory_space<vmem>>, vector<8x128xf32>,
    } else {
    }
    return
  }
  func.func @transform_0(%arg0: i32, %arg1: i32) -> (i32, i32) {
    %c0_i32 = arith.constant 0 : i32
    %c0_i32_0 = arith.constant 0 : i32
    %c0_i32_1 = arith.constant 0 : i32
    return %c0_i32, %c0_i32_0 : i32, i32
  }
  func.func @transform_1(%arg0: i32, %arg1: i32) -> (i32, i32) {
    %c0_i32 = arith.constant 0 : i32
    %c0_i32_0 = arith.constant 0 : i32
    %c0_i32_1 = arith.constant 0 : i32
    return %c0_i32, %c0_i32_0 : i32, i32
  }
  func.func @transform_2(%arg0: i32, %arg1: i32) -> (i32, i32) {
    %c0_i32 = arith.constant 0 : i32
    return %arg1, %arg0 : i32, i32
  }
  func.func @transform_3(%arg0: i32, %arg1: i32) -> (i32, i32) {
    %c0_i32 = arith.constant 0 : i32
    %c0_i32_0 = arith.constant 0 : i32
    return %c0_i32, %arg0 : i32, i32
  }
}

</mosaic_0001>

<llo_original>
// kernel: tpu_custom_call.1
$region0: #{tpu_custom_call.1}
  #allocation0 [shape = 'u32[]', space=smem, size = 0x4, offset = 0x4, fixed_abs, tag = 'smem constant byte address 0x4 - core index']
  #allocation1 [shape = 'u32[144,128]{1,0:T(1,128)}', space=vmem, size = 0x12000, scoped, tag = 'internal scratch']
  #allocation2 [shape = 'f32[8,128]{1,0:T(8,128)}', space=vmem, size = 0x1000, scoped, tag = 'scratch operand']
  %s0 = inlined_call_operand.vmem [shape: s32[8,1], index: 0, kind: input, shape index: {}]
  %s1 = inlined_call_operand.vmem [shape: s32[8,1], index: 1, kind: input, shape index: {}]
  %s2 = inlined_call_operand.vmem [shape: f32[16,128], index: 2, kind: input, shape index: {}]
  %s3 = inlined_call_operand.hbm [shape: f32[8,128], index: 3, kind: output, shape index: {}]
  %s4 = sld [smem:[#allocation0]]
  $region30: #{tpu_custom_call.1} parent=0
    _
  %s6 = ssub.s32 1, %s4
  %s7 = scalar_select 0, %s6, %s4
  $region1: #{tpu_custom_call.1} parent=0
    #allocation3 [shape = 'u8[4096]{0}', space=vmem, size = 0x1000, scoped, tag = 'output window, operand 0, single buffered']
    #allocation4 [shape = 's32[1]{0}', space=sflag, size = 0x4, scoped, tag = 'scoped memory for tpu_custom_call.1']
    %8 = vsyncpa [#allocation4], 0
    // Predicated region
    $region2: #{tpu_custom_call.1} parent=1 // pred_check
      _
    $region3: #{tpu_custom_call.1} parent=1 // pred_check_branch
      %10 = sbr.rel (0) target = $region5
    $region4: #{tpu_custom_call.1} parent=1 // pred_region
      _
    $region5: #{tpu_custom_call.1} parent=1 // pred_fallthru
      _
    // Predicated region
    $region6: #{tpu_custom_call.1} parent=1 // pred_check
      _
    $region7: #{tpu_custom_call.1} parent=1 // pred_check_branch
      %12 = sbr.rel (0) target = $region9
    $region8: #{tpu_custom_call.1} parent=1 // pred_region
      _
    $region9: #{tpu_custom_call.1} parent=1 // pred_fallthru
      _
    // Predicated region
    $region10: #{tpu_custom_call.1} parent=1 // pred_check
      _
    $region11: #{tpu_custom_call.1} parent=1 // pred_check_branch
      %14 = sbr.rel (0) target = $region13
    $region12: #{tpu_custom_call.1} parent=1 // pred_region
      _
    $region13: #{tpu_custom_call.1} parent=1 // pred_fallthru
      _
    %p15 = scmp.eq.s32.totalorder 0, 0
    // Predicated region
    $region14: #{tpu_custom_call.1} parent=1 // pred_check
      %p16 = pneg %p15
    $region15: #{tpu_custom_call.1} parent=1 // pred_check_branch
      %18 = sbr.rel (%p16) target = $region17
    $region16: #{tpu_custom_call.1} parent=1 // pred_region
      %19 = vst [vmem:[#allocation2] sm:$0xff] 0.0
    $region17: #{tpu_custom_call.1} parent=1 // pred_fallthru
      _
    %v20 = vld [vmem:[%s0] sm:$0xff]
    %v21 = vld [vmem:[%s1] sm:$0xff]
    %v22 = vadd.s32 %v20, %v21
    %s23 = smul.u32 0, 16
    %v24 = vlaneseq
    %v25 = vand.u32 %v24, 127
    %v26 = vstv %s23
    %v27 = vadd.s32 %v26, %v25
    %28 = vset.pattern.permute.xlu0 0
    %29 = vperm.xlu0 %28, %v20
    %v30 = vpop.permute.xlu0 %29
    %vm31 = vcmp.ge.s32.totalorder %v27, %v30
    %32 = vset.pattern.permute.xlu0 0
    %33 = vperm.xlu0 %32, %v22
    %v34 = vpop.permute.xlu0 %33
    %vm35 = vcmp.lt.s32.totalorder %v27, %v34
    %vm36 = vmand %vm31, %vm35
    %v37 = vsel %vm36, 1, 0
    %v38 = vcvt.s32.f32 %v37
    %v39 = vld [vmem:[#allocation2] sm:$0xff]
    %v40 = vld [vmem:[%s2] sm:$0xff]
    %v41 = vld [vmem:[%s2 + $0x8] sm:$0xff]
    %vm42 = vcmask 130048
    %v44 = vsel %vm42, %v38, 0
    %46 = vmatprep.subr.mxu0 0.0
    %47 = vmatpush1.msra.mxu0 %v40
    %48 = vmatprep.subr.mxu0 0.0
    %49 = vmatpush1.msra.mxu0 %v41
    %50 = vmatprep.subr.mxu0 0.0
    %51 = vmatpush1.msra.mxu0 0.0
    %52 = vmatprep.subr.mxu0 0.0
    %53 = vmatpush1.msra.mxu0 0.0
    %54 = vmatprep.subr.mxu0 0.0
    %55 = vmatpush1.msra.mxu0 0.0
    %56 = vmatprep.subr.mxu0 0.0
    %57 = vmatpush1.msra.mxu0 0.0
    %58 = vmatprep.subr.mxu0 0.0
    %59 = vmatpush1.msra.mxu0 0.0
    %60 = vmatprep.subr.mxu0 0.0
    %61 = vmatpush1.msra.mxu0 0.0
    %62 = vmatprep.subr.mxu0 0.0
    %63 = vmatpush1.msra.mxu0 0.0
    %64 = vmatprep.subr.mxu0 0.0
    %65 = vmatpush1.msra.mxu0 0.0
    %66 = vmatprep.subr.mxu0 0.0
    %67 = vmatpush1.msra.mxu0 0.0
    %68 = vmatprep.subr.mxu0 0.0
    %69 = vmatpush1.msra.mxu0 0.0
    %70 = vmatprep.subr.mxu0 0.0
    %71 = vmatpush1.msra.mxu0 0.0
    %72 = vmatprep.subr.mxu0 0.0
    %73 = vmatpush1.msra.mxu0 0.0
    %74 = vmatprep.subr.mxu0 0.0
    %75 = vmatpush1.msra.mxu0 0.0
    %76 = vmatprep.subr.mxu0 0.0
    %77 = vmatpush1.msra.mxu0 0.0
    %78 = vmatprep.subr.mxu0 0.0
    %79 = vmatpush1.msra.mxu0 0.0
    %80 = vmatprep.subr.mxu0 0.0
    %81 = vmatpush1.msra.mxu0 0.0
    %82 = vmatprep.subr.mxu0 0.0
    %83 = vmatpush1.msra.mxu0 0.0
    %84 = vmatprep.subr.mxu0 0.0
    %85 = vmatpush1.msra.mxu0 0.0
    %86 = vmatprep.subr.mxu0 0.0
    %87 = vmatpush1.msra.mxu0 0.0
    %88 = vmatprep.subr.mxu0 0.0
    %89 = vmatpush1.msra.mxu0 0.0
    %90 = vmatprep.subr.mxu0 0.0
    %91 = vmatpush1.msra.mxu0 0.0
    %92 = vmatprep.subr.mxu0 0.0
    %93 = vmatpush1.msra.mxu0 0.0
    %94 = vmatprep.subr.mxu0 0.0
    %95 = vmatpush1.msra.mxu0 0.0
    %96 = vmatprep.subr.mxu0 0.0
    %97 = vmatpush1.msra.mxu0 0.0
    %98 = vmatprep.subr.mxu0 0.0
    %99 = vmatpush1.msra.mxu0 0.0
    %100 = vmatprep.subr.mxu0 0.0
    %101 = vmatpush1.msra.mxu0 0.0
    %102 = vmatprep.subr.mxu0 0.0
    %103 = vmatpush1.msra.mxu0 0.0
    %104 = vmatprep.subr.mxu0 0.0
    %105 = vmatpush1.msra.mxu0 0.0
    %106 = vmatprep.subr.mxu0 0.0
    %107 = vmatpush1.msra.mxu0 0.0
    %108 = vmatprep.subr.mxu0 0.0
    %109 = vmatpush1.msra.mxu0 0.0
    %110 = vmatprep.mubr.f32.mxu0 0.0
    %111 = vmatmul.mubr.f32.gmra.mrb[0].mxu0 %v44
    %v112 = vpop.f32.mrb[0].mxu0
    %v113 = vadd.f32 0.0, %v112
    %v114 = vpop.f32.mrb[0].mxu0
    %115 = vdwg.mxu0
    %v116 = vadd.f32 %v39, %v113
    %117 = vst [vmem:[#allocation2] sm:$0xff] %v116
    // Predicated region
    $region18: #{tpu_custom_call.1} parent=1 // pred_check
      %p118 = pneg %p15
    $region19: #{tpu_custom_call.1} parent=1 // pred_check_branch
      %120 = sbr.rel (%p118) target = $region21
    $region20: #{tpu_custom_call.1} parent=1 // pred_region
      %v121 = vld [vmem:[%s1] sm:$0xff]
      %vm122 = vcmp.gt.s32.totalorder %v121, 1
      %v123 = vsel %vm122, %v121, 1
      %v124 = vcvt.s32.f32 %v123
      %v125 = vrcp.pop %v124
      %v126 = vmul.f32 1.0, %v125
      %v127 = vld [vmem:[#allocation2] sm:$0xff]
      %129 = vset.pattern.permute.xlu0 0
      %130 = vperm.xlu0 %129, %v126
      %v131 = vpop.permute.xlu0 %130
      %v133 = vmul.f32 %v127, %v131
      %134 = vst [vmem:[#allocation3] sm:$0xff] %v133
    $region21: #{tpu_custom_call.1} parent=1 // pred_fallthru
      _
    // Predicated region
    $region22: #{tpu_custom_call.1} parent=1 // pred_check
      _
    $region23: #{tpu_custom_call.1} parent=1 // pred_check_branch
      %136 = sbr.rel (0) target = $region25
    $region24: #{tpu_custom_call.1} parent=1 // pred_region
      %s138 = ssub.s32 128, 128
      %139 = vsyncadd [#allocation4], %s138
      %s141 = sshll.u32 [#allocation3], 4
      %s142 = int_to_ptr.vmem [resolvable:$true] %s141
      %144 = dma.vmem_to_hbm [thread:$0]  %s142, 128, %s3, [#allocation4]
    $region25: #{tpu_custom_call.1} parent=1 // pred_fallthru
      _
    // Predicated region
    $region26: #{tpu_custom_call.1} parent=1 // pred_check
      _
    $region27: #{tpu_custom_call.1} parent=1 // pred_check_branch
      %146 = sbr.rel (0) target = $region29
    $region28: #{tpu_custom_call.1} parent=1 // pred_region
      %147 = dma.done [#allocation4], 128
    $region29: #{tpu_custom_call.1} parent=1 // pred_fallthru
      _
    %148 = vsyncpa [#allocation4], 1

</llo_original>
